<compile_context>
chip_gen: v7x
topology: tpu7x:2x2x1
jax: 0.10.0
libtpu: 0.0.40
codegen_flags: <defaults>
</compile_context>

<pallas_src>
import functools

import jax
import jax.numpy as jnp
import numpy as np
from jax.experimental import pallas as pl
from jax.experimental.pallas import tpu as pltpu


# ----------------------------- Pallas kernel -------------------------------

def _pool_linear_kernel(x_ref, w_ref, b_ref, o_ref, acc_ref, *, inv_hw):
    """Global-avg-pool + Linear, fused.

    x_ref:   (N, t_hw, C)  tile of the channels-last activation
    w_ref:   (C, Cout)     linear weight (resident)
    b_ref:   (1, Cout)     linear bias   (resident)
    o_ref:   (N, Cout)     output (written on the last grid step)
    acc_ref: (N, C)        VMEM scratch: running per-(batch, channel) sums
    """
    step = pl.program_id(0)

    @pl.when(step == 0)
    def _():
        acc_ref[...] = jnp.zeros_like(acc_ref)

    # Accumulate spatial sums for this row-tile.  C is on the lane axis, so
    # this is a dense sublane reduction feeding the VPU/XLU.
    acc_ref[...] += jnp.sum(x_ref[...], axis=1)

    @pl.when(step == pl.num_programs(0) - 1)
    def _():
        pooled = acc_ref[...] * inv_hw                           # (N, C) mean
        o_ref[...] = (
            jnp.dot(pooled, w_ref[...], preferred_element_type=jnp.float32)
            + b_ref[...]
        )


# ------------------------------ wrapper -------------------------------------

def _pick_tile_rows(hw, target=1024):
    """Largest row-tile <= target that divides hw and is a multiple of 8
    (or the full extent if hw itself is small / has no such divisor)."""
    if hw <= target:
        return hw
    best = 0
    for t in range(8, target + 1, 8):
        if hw % t == 0:
            best = t
    return best if best > 0 else hw


def bt5_forward(img_nchw, weight, bias, tile_rows=None):
    """img_nchw: (N, C, H, W); weight: (Cout, C) [PyTorch layout]; bias: (Cout,)."""
    N, C, H, W = img_nchw.shape
    Cout = weight.shape[0]
    HW = H * W

    # channels-last, spatial rows flattened: (N, H*W, C)
    x = jnp.transpose(img_nchw, (0, 2, 3, 1)).reshape(N, HW, C).astype(jnp.float32)
    w = jnp.transpose(weight, (1, 0)).astype(jnp.float32)        # (C, Cout)
    b = bias.reshape(1, Cout).astype(jnp.float32)

    t_hw = tile_rows if tile_rows is not None else _pick_tile_rows(HW)
    assert HW % t_hw == 0, (HW, t_hw)
    grid = (HW // t_hw,)

    kernel = functools.partial(_pool_linear_kernel, inv_hw=1.0 / float(HW))

    out = pl.pallas_call(
        kernel,
        out_shape=jax.ShapeDtypeStruct((N, Cout), jnp.float32),
        grid=grid,
        in_specs=[
            # streamed activation tiles (double-buffered by the pipeline)
            pl.BlockSpec((N, t_hw, C), lambda i: (0, i, 0)),
            # weight / bias resident in VMEM across the whole grid
            pl.BlockSpec((C, Cout), lambda i: (0, 0)),
            pl.BlockSpec((1, Cout), lambda i: (0, 0)),
        ],
        out_specs=pl.BlockSpec((N, Cout), lambda i: (0, 0)),
        scratch_shapes=[pltpu.VMEM((N, C), jnp.float32)],
        compiler_params=pltpu.CompilerParams(
            dimension_semantics=("arbitrary",),   # grid axis is a reduction
        ),
    )(x, w, b)
    return out


# ------------------------- pure-JAX reference (check) ------------------------

def bt5_reference(img_nchw, weight, bias):
    pooled = jnp.mean(img_nchw.astype(jnp.float32), axis=(2, 3))     # (N, C)
    return pooled @ weight.astype(jnp.float32).T + bias.astype(jnp.float32)


# ---------------------------------- main -------------------------------------

if __name__ == "__main__":
    key = jax.random.PRNGKey(0)
    N, C, H, W, Cout = 2, 128, 16, 16, 3          # Linear(128, 3) implies C=128
    k0, k1, k2 = jax.random.split(key, 3)

    img = jax.random.normal(k0, (N, C, H, W), jnp.float32)
    weight = 0.1 * jax.random.normal(k1, (Cout, C), jnp.float32)   # PyTorch (out, in)
    bias = 0.05 * jax.random.normal(k2, (Cout,), jnp.float32)

    # tile_rows=64 -> 4 grid steps at this demo size, exercising the
    # cross-tile sum accumulation (init / accumulate / finalize) path.
    out = jax.block_until_ready(bt5_forward(img, weight, bias, tile_rows=64))
    ref = jax.block_until_ready(bt5_reference(img, weight, bias))

    assert out.shape == (N, Cout), out.shape
    np.testing.assert_allclose(np.asarray(out), np.asarray(ref),
                               rtol=1e-4, atol=1e-4)
    print("KERNEL_OK")
</pallas_src>

<mosaic_0001>
module attributes {stable_mosaic.version = 11 : i64} {
  func.func @_pool_linear_kernel(%arg0: i32, %arg1: memref<2x64x128xf32, #tpu.memory_space<vmem>>, %arg2: memref<128x3xf32, #tpu.memory_space<vmem>>, %arg3: memref<1x3xf32, #tpu.memory_space<vmem>>, %arg4: memref<2x3xf32, #tpu.memory_space<vmem>>, %arg5: memref<2x128xf32, #tpu.memory_space<vmem>>) attributes {dimension_semantics = [#tpu.dimension_semantics<arbitrary>], iteration_bounds = array<i64: 4>, scalar_prefetch = 0 : i64, scratch_operands = 1 : i64, tpu.core_type = #tpu.core_type<tc>, window_params = [{transform_indices = @transform_0, window_bounds = array<i64: 2, 64, 128>}, {pipeline_mode = #tpu.pipeline_mode<synchronous>, transform_indices = @transform_1, window_bounds = array<i64: 128, 3>}, {pipeline_mode = #tpu.pipeline_mode<synchronous>, transform_indices = @transform_2, window_bounds = array<i64: 1, 3>}, {pipeline_mode = #tpu.pipeline_mode<synchronous>, transform_indices = @transform_3, window_bounds = array<i64: 2, 3>}]} {
    %c0_i32 = arith.constant 0 : i32
    %0 = arith.cmpi eq, %arg0, %c0_i32 : i32
    %1 = arith.extui %0 : i1 to i32
    %c0_i32_0 = arith.constant 0 : i32
    %2 = arith.cmpi ne, %1, %c0_i32_0 : i32
    scf.if %2 {
      %cst_8 = arith.constant 0.000000e+00 : f32
      %11 = vector.broadcast %cst_8 : f32 to vector<2x128xf32>
      %c0_9 = arith.constant 0 : index
      %c0_10 = arith.constant 0 : index
      %12 = vector.load %arg5[%c0_9, %c0_10] : memref<2x128xf32, #tpu.memory_space<vmem>>, vector<2x128xf32>
      tpu.vector_store %arg5[%c0_9, %c0_10], %11 {strides = array<i32>} : memref<2x128xf32, #tpu.memory_space<vmem>>, vector<2x128xf32>,
    } else {
    }
    %c0 = arith.constant 0 : index
    %c0_1 = arith.constant 0 : index
    %3 = vector.load %arg5[%c0, %c0_1] : memref<2x128xf32, #tpu.memory_space<vmem>>, vector<2x128xf32>
    %c0_2 = arith.constant 0 : index
    %c0_3 = arith.constant 0 : index
    %c0_4 = arith.constant 0 : index
    %4 = vector.load %arg1[%c0_2, %c0_3, %c0_4] : memref<2x64x128xf32, #tpu.memory_space<vmem>>, vector<2x64x128xf32>
    %cst = arith.constant dense<0.000000e+00> : vector<2x128xf32>
    %5 = vector.multi_reduction <add>, %4, %cst [1] : vector<2x64x128xf32> to vector<2x128xf32>
    %6 = arith.addf %3, %5 : vector<2x128xf32>
    %c0_5 = arith.constant 0 : index
    %c0_6 = arith.constant 0 : index
    %7 = vector.load %arg5[%c0_5, %c0_6] : memref<2x128xf32, #tpu.memory_space<vmem>>, vector<2x128xf32>
    tpu.vector_store %arg5[%c0_5, %c0_6], %6 {strides = array<i32>} : memref<2x128xf32, #tpu.memory_space<vmem>>, vector<2x128xf32>,
    %c3_i32 = arith.constant 3 : i32
    %8 = arith.cmpi eq, %arg0, %c3_i32 : i32
    %9 = arith.extui %8 : i1 to i32
    %c0_i32_7 = arith.constant 0 : i32
    %10 = arith.cmpi ne, %9, %c0_i32_7 : i32
    scf.if %10 {
      %c0_8 = arith.constant 0 : index
      %c0_9 = arith.constant 0 : index
      %11 = vector.load %arg5[%c0_8, %c0_9] : memref<2x128xf32, #tpu.memory_space<vmem>>, vector<2x128xf32>
      %cst_10 = arith.constant 3.906250e-03 : f32
      %12 = vector.broadcast %cst_10 : f32 to vector<2x128xf32>
      %13 = arith.mulf %11, %12 : vector<2x128xf32>
      %c0_11 = arith.constant 0 : index
      %c0_12 = arith.constant 0 : index
      %14 = vector.load %arg2[%c0_11, %c0_12] : memref<128x3xf32, #tpu.memory_space<vmem>>, vector<128x3xf32>
      %cst_13 = arith.constant dense<0.000000e+00> : vector<2x3xf32>
      %15 = tpu.matmul %13, %14, %cst_13 {dimension_numbers = #tpu.dot_dimension_numbers<[1], [0], [0], [1], [0, 0, 1, 1], [], []>} : vector<2x128xf32>, vector<128x3xf32>, vector<2x3xf32> -> vector<2x3xf32>
      %c0_14 = arith.constant 0 : index
      %c0_15 = arith.constant 0 : index
      %16 = vector.load %arg3[%c0_14, %c0_15] : memref<1x3xf32, #tpu.memory_space<vmem>>, vector<1x3xf32>
      %17 = vector.broadcast %16 : vector<1x3xf32> to vector<2x3xf32>
      %18 = arith.addf %15, %17 : vector<2x3xf32>
      %c0_16 = arith.constant 0 : index
      %c0_17 = arith.constant 0 : index
      %19 = vector.load %arg4[%c0_16, %c0_17] : memref<2x3xf32, #tpu.memory_space<vmem>>, vector<2x3xf32>
      tpu.vector_store %arg4[%c0_16, %c0_17], %18 {strides = array<i32>} : memref<2x3xf32, #tpu.memory_space<vmem>>, vector<2x3xf32>,
    } else {
    }
    return
  }
  func.func @transform_0(%arg0: i32) -> (i32, i32, i32) {
    %c0_i32 = arith.constant 0 : i32
    %c0_i32_0 = arith.constant 0 : i32
    %c0_i32_1 = arith.constant 0 : i32
    return %c0_i32, %arg0, %c0_i32_0 : i32, i32, i32
  }
  func.func @transform_1(%arg0: i32) -> (i32, i32) {
    %c0_i32 = arith.constant 0 : i32
    %c0_i32_0 = arith.constant 0 : i32
    %c0_i32_1 = arith.constant 0 : i32
    return %c0_i32, %c0_i32_0 : i32, i32
  }
  func.func @transform_2(%arg0: i32) -> (i32, i32) {
    %c0_i32 = arith.constant 0 : i32
    %c0_i32_0 = arith.constant 0 : i32
    %c0_i32_1 = arith.constant 0 : i32
    return %c0_i32, %c0_i32_0 : i32, i32
  }
  func.func @transform_3(%arg0: i32) -> (i32, i32) {
    %c0_i32 = arith.constant 0 : i32
    %c0_i32_0 = arith.constant 0 : i32
    %c0_i32_1 = arith.constant 0 : i32
    return %c0_i32, %c0_i32_0 : i32, i32
  }
}

</mosaic_0001>

<llo_original>
// kernel: tpu_custom_call.1
$region0: #{tpu_custom_call.1}
  #allocation0 [shape = 'u32[]', space=smem, size = 0x4, offset = 0x4, fixed_abs, tag = 'smem constant byte address 0x4 - core index']
  #allocation1 [shape = 'u32[144,128]{1,0:T(1,128)}', space=vmem, size = 0x12000, scoped, tag = 'internal scratch']
  #allocation2 [shape = 'f32[2,128]{1,0:T(2,128)}', space=vmem, size = 0x400, scoped, tag = 'scratch operand']
  #allocation7 [shape = 's32[]', space=sflag, size = 0x4, offset = 0, fixed_abs, tag = 'sflag constant byte address 0x0 - dummy sync flag']
  %s0 = inlined_call_operand.hbm [shape: f32[2,256,128], index: 0, kind: input, shape index: {}]
  %s1 = inlined_call_operand.vmem [shape: f32[128,3], index: 1, kind: input, shape index: {}]
  %s2 = inlined_call_operand.vmem [shape: f32[1,3], index: 2, kind: input, shape index: {}]
  %s3 = inlined_call_operand.hbm [shape: f32[2,3], index: 3, kind: output, shape index: {}]
  %s4 = sld [smem:[#allocation0]]
  $region57: #{tpu_custom_call.1} parent=0
    _
  %s6 = ssub.s32 1, %s4
  %s7 = scalar_select 0, %s6, %s4
  $region1: #{tpu_custom_call.1} parent=0
    #allocation3 [shape = 'u8[131072]{0}', space=vmem, size = 0x20000, scoped, tag = 'input window, operand 0']
    #allocation4 [shape = 's32[2]{0}', space=sflag, size = 0x8, scoped, tag = 'scoped memory for tpu_custom_call.1']
    #allocation5 [shape = 's32[2]{0}', space=sflag, size = 0x8, scoped, tag = 'scoped memory for tpu_custom_call.1']
    #allocation6 [shape = 'u8[1024]{0}', space=vmem, size = 0x400, scoped, tag = 'output window, operand 0, single buffered']
    %8 = vsyncpa [#allocation4], 0
    %s9 = scalar_lea.sflag [#allocation4], 1
    %10 = vsyncpa %s9, 0
    %11 = vsyncpa [#allocation5], 0
    loop: start=0, step=1, limit=6
    $region2: #{tpu_custom_call.1} parent=1 // loop_pre_header
      _
    $region3: #{tpu_custom_call.1} parent=1 // loop_header
      %s13 = sphi 0, %s17
      %p14 = scmp.ge.s32.totalorder %s13, 6
      %s23 = sphi 0, %s25
      %s26 = sphi 0, %s23
      %s27 = sphi 0, %s26
      %s43 = sphi 0, %s27
      %s47 = sphi 0, %s47
      %s49 = sphi 0, %s47
      %s50 = sphi 0, %s49
      %s64 = sphi 0, %s50
      %s68 = sphi 0, %s68
      %s70 = sphi 0, %s68
      %s71 = sphi 0, %s70
      %s85 = sphi 0, %s71
      %s89 = sphi 0, %s89
      %s91 = sphi 0, %s89
      %s92 = sphi 0, %s91
      %s106 = sphi 0, %s92
    $region4: #{tpu_custom_call.1} parent=1 // loop_header_branch
      %16 = sbr.rel (%p14) target = $region8
    $region5: #{tpu_custom_call.1} parent=1 // loop_body
      %s18 = ssub.s32 %s13, 1
      %s19 = ssub.s32 %s13, 2
      %s20 = sadd.s32 %s13, 1
      %s21 = ssub.s32 %s13, %s20
      %p22 = scmp.eq.s32.totalorder %s21, 0
      %s24 = sadd.s32 %s23, 1
      %s25 = scalar_select %p22, %s23, %s24
      %p28 = pneg %p22
      %p29 = scmp.eq.s32.totalorder %s13, 3
      %p30 = por %p28, %p29
      %p31 = scmp.ne.s32.totalorder %s23, %s26
      %p32 = scmp.eq.s32.totalorder %s13, 0
      %p33 = por %p31, %p32
      %p34 = scmp.ne.s32.totalorder %s23, %s26
      %p35 = scmp.eq.s32.totalorder %s18, 3
      %p36 = por %p34, %p35
      %p37 = scmp.ne.s32.totalorder %s26, %s27
      %p38 = scmp.eq.s32.totalorder %s18, 0
      %p39 = por %p37, %p38
      %p40 = scmp.ne.s32.totalorder %s26, %s27
      %p41 = scmp.eq.s32.totalorder %s19, 3
      %p42 = por %p40, %p41
      %p44 = scmp.ne.s32.totalorder %s27, %s43
      %p45 = scmp.eq.s32.totalorder %s19, 0
      %p46 = por %p44, %p45
      %s48 = sadd.s32 %s47, 1
      %p51 = scmp.eq.s32.totalorder %s13, 3
      %p52 = scmp.ne.s32.totalorder %s47, %s49
      %p53 = scmp.eq.s32.totalorder %s13, 0
      %p54 = por %p52, %p53
      %p55 = scmp.ne.s32.totalorder %s47, %s49
      %p56 = scmp.eq.s32.totalorder %s18, 3
      %p57 = por %p55, %p56
      %p58 = scmp.ne.s32.totalorder %s49, %s50
      %p59 = scmp.eq.s32.totalorder %s18, 0
      %p60 = por %p58, %p59
      %p61 = scmp.ne.s32.totalorder %s49, %s50
      %p62 = scmp.eq.s32.totalorder %s19, 3
      %p63 = por %p61, %p62
      %p65 = scmp.ne.s32.totalorder %s50, %s64
      %p66 = scmp.eq.s32.totalorder %s19, 0
      %p67 = por %p65, %p66
      %s69 = sadd.s32 %s68, 1
      %p72 = scmp.eq.s32.totalorder %s13, 3
      %p73 = scmp.ne.s32.totalorder %s68, %s70
      %p74 = scmp.eq.s32.totalorder %s13, 0
      %p75 = por %p73, %p74
      %p76 = scmp.ne.s32.totalorder %s68, %s70
      %p77 = scmp.eq.s32.totalorder %s18, 3
      %p78 = por %p76, %p77
      %p79 = scmp.ne.s32.totalorder %s70, %s71
      %p80 = scmp.eq.s32.totalorder %s18, 0
      %p81 = por %p79, %p80
      %p82 = scmp.ne.s32.totalorder %s70, %s71
      %p83 = scmp.eq.s32.totalorder %s19, 3
      %p84 = por %p82, %p83
      %p86 = scmp.ne.s32.totalorder %s71, %s85
      %p87 = scmp.eq.s32.totalorder %s19, 0
      %p88 = por %p86, %p87
      %s90 = sadd.s32 %s89, 1
      %p93 = scmp.eq.s32.totalorder %s13, 3
      %p94 = scmp.ne.s32.totalorder %s89, %s91
      %p95 = scmp.eq.s32.totalorder %s13, 0
      %p96 = por %p94, %p95
      %p97 = scmp.ne.s32.totalorder %s89, %s91
      %p98 = scmp.eq.s32.totalorder %s18, 3
      %p99 = por %p97, %p98
      %p100 = scmp.ne.s32.totalorder %s91, %s92
      %p101 = scmp.eq.s32.totalorder %s18, 0
      %p102 = por %p100, %p101
      %p103 = scmp.ne.s32.totalorder %s91, %s92
      %p104 = scmp.eq.s32.totalorder %s19, 3
      %p105 = por %p103, %p104
      %p107 = scmp.ne.s32.totalorder %s92, %s106
      %p108 = scmp.eq.s32.totalorder %s19, 0
      %p109 = por %p107, %p108
      %p110 = scmp.le.s32.totalorder 1, %s13
      %p111 = scmp.lt.s32.totalorder %s13, 5
      %p112 = pnand %p110, %p111
      %p113 = pneg %p112
      // Predicated region
      $region9: #{tpu_custom_call.1} parent=5 // pred_check
        _
      $region10: #{tpu_custom_call.1} parent=5 // pred_check_branch
        %115 = sbr.rel (%p112) target = $region12
      $region11: #{tpu_custom_call.1} parent=5 // pred_region
        %s116 = ssub.s32 %s13, 1
        // Predicated region
        $region13: #{tpu_custom_call.1} parent=11 // pred_check
          %p117 = pneg %p60
        $region14: #{tpu_custom_call.1} parent=11 // pred_check_branch
          %119 = sbr.rel (%p117) target = $region16
        $region15: #{tpu_custom_call.1} parent=11 // pred_region
          _
        $region16: #{tpu_custom_call.1} parent=11 // pred_fallthru
          _
        // Predicated region
        $region17: #{tpu_custom_call.1} parent=11 // pred_check
          %p120 = pneg %p81
        $region18: #{tpu_custom_call.1} parent=11 // pred_check_branch
          %122 = sbr.rel (%p120) target = $region20
        $region19: #{tpu_custom_call.1} parent=11 // pred_region
          _
        $region20: #{tpu_custom_call.1} parent=11 // pred_fallthru
          _
      $region12: #{tpu_custom_call.1} parent=5 // pred_fallthru
        _
      %p123 = scmp.lt.s32.totalorder %s13, 4
      // Predicated region
      $region21: #{tpu_custom_call.1} parent=5 // pred_check
        %p124 = pneg %p123
      $region22: #{tpu_custom_call.1} parent=5 // pred_check_branch
        %126 = sbr.rel (%p124) target = $region24
      $region23: #{tpu_custom_call.1} parent=5 // pred_region
        // Predicated region
        $region25: #{tpu_custom_call.1} parent=23 // pred_check
          %p127 = pneg %p33
        $region26: #{tpu_custom_call.1} parent=23 // pred_check_branch
          %129 = sbr.rel (%p127) target = $region28
        $region27: #{tpu_custom_call.1} parent=23 // pred_region
          #allocation8 [shape = 'u32[6]{0}', space=smem, size = 0x18, scoped, tag = 'DMA stride descriptor']
          %s130 = sand.u32 %s23, 1
          %s131 = scalar_lea.sflag [#allocation4], %s130
          %s132 = sand.u32 %s23, 1
          %s133 = smul.addr %s132, 128
          %s134 = scalar_lea.vmem [#allocation3], %s133
          %s135 = smul.u32 8, %s13
          %s137 = ssub.s32 2048, 2048
          %138 = vsyncadd %s131, %s137
          %s139 = smul.addr %s135, 128
          %s140 = scalar_lea.hbm %s0, %s139
          %s142 = sshll.u32 1, 14
          %s143 = sxor.u32 4294967295, %s142
          %s145 = sld [smem:[#allocation0]]
          %s146 = sadd.s32 2, %s145
          %s148 = sshll.u32 7, 26
          %s149 = sxor.u32 4294967295, %s148
          %s150 = sand.u32 0, %s149
          %s151 = sshll.u32 %s146, 26
          %s152 = sor.u32 %s150, %s151
          %s153 = sshll.u32 %s134, 4
          %s154 = int_to_ptr.vmem [resolvable:$true] %s153
          %160 = sst [smem:[#allocation8]] 4096
          %s161 = scalar_lea.smem [#allocation8], 1
          %162 = sst [smem:[%s161]] 1024
          %s163 = scalar_lea.smem [#allocation8], 2
          %164 = sst [smem:[%s163]] 8
          %s165 = scalar_lea.smem [#allocation8], 3
          %166 = sst [smem:[%s165]] 128
          %s167 = scalar_lea.smem [#allocation8], 4
          %168 = sst [smem:[%s167]] 128
          %s169 = scalar_lea.smem [#allocation8], 5
          %170 = sst [smem:[%s169]] 8
          %172 = dma.general %s140, 2048, %s154, %s131, [#allocation7], [#allocation8], %s152, 0
        $region28: #{tpu_custom_call.1} parent=23 // pred_fallthru
          _
      $region24: #{tpu_custom_call.1} parent=5 // pred_fallthru
        _
      %p173 = scmp.le.s32.totalorder 1, %s13
      %p174 = scmp.lt.s32.totalorder %s13, 5
      %p175 = pnand %p173, %p174
      %p176 = pneg %p175
      // Predicated region
      $region29: #{tpu_custom_call.1} parent=5 // pred_check
        _
      $region30: #{tpu_custom_call.1} parent=5 // pred_check_branch
        %178 = sbr.rel (%p175) target = $region32
      $region31: #{tpu_custom_call.1} parent=5 // pred_region
        %s179 = ssub.s32 %s13, 1
        %s180 = sand.u32 %s26, 1
        %s181 = scalar_lea.sflag [#allocation4], %s180
        %s182 = sand.u32 %s26, 1
        %s183 = smul.addr %s182, 128
        %s184 = scalar_lea.vmem [#allocation3], %s183
        // Predicated region
        $region33: #{tpu_custom_call.1} parent=31 // pred_check
          %p185 = pneg %p39
        $region34: #{tpu_custom_call.1} parent=31 // pred_check_branch
          %187 = sbr.rel (%p185) target = $region36
        $region35: #{tpu_custom_call.1} parent=31 // pred_region
          %188 = dma.done %s181, 2048
        $region36: #{tpu_custom_call.1} parent=31 // pred_fallthru
          _
        %s189 = sand.u32 %s26, 1
        %s190 = scalar_lea.sflag [#allocation4], %s189
        %s191 = sand.u32 %s26, 1
        %s192 = smul.addr %s191, 128
        %s193 = scalar_lea.vmem [#allocation3], %s192
        %p194 = pneg %p39
        %p195 = pneg %p36
        %p196 = pneg %p60
        %p197 = pneg %p57
        %p198 = pneg %p81
        %p199 = pneg %p78
        %p200 = pneg %p102
        %p201 = pneg %p99
        %s202 = smul.u32 8, %s18
        %p203 = scmp.eq.s32.totalorder %s18, 0
        // Predicated region
        $region37: #{tpu_custom_call.1} parent=31 // pred_check
          %p204 = pneg %p203
        $region38: #{tpu_custom_call.1} parent=31 // pred_check_branch
          %206 = sbr.rel (%p204) target = $region40
        $region39: #{tpu_custom_call.1} parent=31 // pred_region
          %207 = vst [vmem:[#allocation2] sm:$0x3] 0.0
        $region40: #{tpu_custom_call.1} parent=31 // pred_fallthru
          _
        %v208 = vld [vmem:[#allocation2] sm:$0x3]
        %v209 = vld [vmem:[%s184] sm:$0xff]
        %v210 = vld [vmem:[%s184 + $0x8] sm:$0xff]
        %v211 = vld [vmem:[%s184 + $0x10] sm:$0xff]
        %v212 = vld [vmem:[%s184 + $0x18] sm:$0xff]
        %v213 = vld [vmem:[%s184 + $0x20] sm:$0xff]
        %v214 = vld [vmem:[%s184 + $0x28] sm:$0xff]
        %v215 = vld [vmem:[%s184 + $0x30] sm:$0xff]
        %v216 = vld [vmem:[%s184 + $0x38] sm:$0xff]
        %v217 = vld [vmem:[%s184 + $0x40] sm:$0xff]
        %v218 = vld [vmem:[%s184 + $0x48] sm:$0xff]
        %v219 = vld [vmem:[%s184 + $0x50] sm:$0xff]
        %v220 = vld [vmem:[%s184 + $0x58] sm:$0xff]
        %v221 = vld [vmem:[%s184 + $0x60] sm:$0xff]
        %v222 = vld [vmem:[%s184 + $0x68] sm:$0xff]
        %v223 = vld [vmem:[%s184 + $0x70] sm:$0xff]
        %v224 = vld [vmem:[%s184 + $0x78] sm:$0xff]
        %v225 = vadd.f32 %v209, %v210
        %v226 = vadd.f32 %v225, %v211
        %v227 = vadd.f32 %v226, %v212
        %v228 = vadd.f32 %v227, %v213
        %v229 = vadd.f32 %v228, %v214
        %v230 = vadd.f32 %v229, %v215
        %v231 = vadd.f32 %v230, %v216
        %v232 = vrot.slane %v231, 4
        %v233 = vadd.f32 %v231, %v232
        %v234 = vrot.slane %v233, 2
        %v235 = vadd.f32 %v233, %v234
        %v236 = vrot.slane %v235, 1
        %v237 = vadd.f32 %v235, %v236
        %v238 = vadd.f32 %v217, %v218
        %v239 = vadd.f32 %v238, %v219
        %v240 = vadd.f32 %v239, %v220
        %v241 = vadd.f32 %v240, %v221
        %v242 = vadd.f32 %v241, %v222
        %v243 = vadd.f32 %v242, %v223
        %v244 = vadd.f32 %v243, %v224
        %v245 = vrot.slane %v244, 4
        %v246 = vadd.f32 %v244, %v245
        %v247 = vrot.slane %v246, 2
        %v248 = vadd.f32 %v246, %v247
        %v249 = vrot.slane %v248, 1
        %v250 = vadd.f32 %v248, %v249
        %vm253 = vcmask 1041409
        %v254 = vsel %vm253, %v250, %v237
        %v256 = vadd.f32 %v208, %v254
        %257 = vst [vmem:[#allocation2] sm:$0x3] %v256
        %p258 = scmp.eq.s32.totalorder %s18, 3
        // Predicated region
        $region41: #{tpu_custom_call.1} parent=31 // pred_check
          %p259 = pneg %p258
        $region42: #{tpu_custom_call.1} parent=31 // pred_check_branch
          %261 = sbr.rel (%p259) target = $region44
        $region43: #{tpu_custom_call.1} parent=31 // pred_region
          %v262 = vld [vmem:[#allocation2] sm:$0x3]
          %v263 = vmul.f32 %v262, 0.00390625
          %v264 = vld [vmem:[%s1] sm:$0xff]
          %v265 = vld [vmem:[%s1 + $0x8] sm:$0xff]
          %v266 = vld [vmem:[%s1 + $0x10] sm:$0xff]
          %v267 = vld [vmem:[%s1 + $0x18] sm:$0xff]
          %v268 = vld [vmem:[%s1 + $0x20] sm:$0xff]
          %v269 = vld [vmem:[%s1 + $0x28] sm:$0xff]
          %v270 = vld [vmem:[%s1 + $0x30] sm:$0xff]
          %v271 = vld [vmem:[%s1 + $0x38] sm:$0xff]
          %v272 = vld [vmem:[%s1 + $0x40] sm:$0xff]
          %v273 = vld [vmem:[%s1 + $0x48] sm:$0xff]
          %v274 = vld [vmem:[%s1 + $0x50] sm:$0xff]
          %v275 = vld [vmem:[%s1 + $0x58] sm:$0xff]
          %v276 = vld [vmem:[%s1 + $0x60] sm:$0xff]
          %v277 = vld [vmem:[%s1 + $0x68] sm:$0xff]
          %v278 = vld [vmem:[%s1 + $0x70] sm:$0xff]
          %v279 = vld [vmem:[%s1 + $0x78] sm:$0xff]
          %v280 = vld [vmem:[%s2] sm:$0x1]
          %v282 = vlaneseq
          %v283 = vshrl.u32 %v282, 7
          %v284 = vsub.s32 0, %v283
          %v285 = vrot.slane %v280, %v284
          %287 = vmatprep.subr.mxu0 0.0
          %288 = vmatpush1.msra.mxu0 %v264
          %289 = vmatprep.subr.mxu0 0.0
          %290 = vmatpush1.msra.mxu0 %v265
          %291 = vmatprep.subr.mxu0 0.0
          %292 = vmatpush1.msra.mxu0 %v266
          %293 = vmatprep.subr.mxu0 0.0
          %294 = vmatpush1.msra.mxu0 %v267
          %295 = vmatprep.subr.mxu0 0.0
          %296 = vmatpush1.msra.mxu0 %v268
          %297 = vmatprep.subr.mxu0 0.0
          %298 = vmatpush1.msra.mxu0 %v269
          %299 = vmatprep.subr.mxu0 0.0
          %300 = vmatpush1.msra.mxu0 %v270
          %301 = vmatprep.subr.mxu0 0.0
          %302 = vmatpush1.msra.mxu0 %v271
          %303 = vmatprep.subr.mxu0 0.0
          %304 = vmatpush1.msra.mxu0 %v272
          %305 = vmatprep.subr.mxu0 0.0
          %306 = vmatpush1.msra.mxu0 %v273
          %307 = vmatprep.subr.mxu0 0.0
          %308 = vmatpush1.msra.mxu0 %v274
          %309 = vmatprep.subr.mxu0 0.0
          %310 = vmatpush1.msra.mxu0 %v275
          %311 = vmatprep.subr.mxu0 0.0
          %312 = vmatpush1.msra.mxu0 %v276
          %313 = vmatprep.subr.mxu0 0.0
          %314 = vmatpush1.msra.mxu0 %v277
          %315 = vmatprep.subr.mxu0 0.0
          %316 = vmatpush1.msra.mxu0 %v278
          %317 = vmatprep.subr.mxu0 0.0
          %318 = vmatpush1.msra.mxu0 %v279
          %319 = vmatprep.subr.mxu0 0.0
          %320 = vmatpush1.msra.mxu0 0.0
          %321 = vmatprep.subr.mxu0 0.0
          %322 = vmatpush1.msra.mxu0 0.0
          %323 = vmatprep.subr.mxu0 0.0
          %324 = vmatpush1.msra.mxu0 0.0
          %325 = vmatprep.subr.mxu0 0.0
          %326 = vmatpush1.msra.mxu0 0.0
          %327 = vmatprep.subr.mxu0 0.0
          %328 = vmatpush1.msra.mxu0 0.0
          %329 = vmatprep.subr.mxu0 0.0
          %330 = vmatpush1.msra.mxu0 0.0
          %331 = vmatprep.subr.mxu0 0.0
          %332 = vmatpush1.msra.mxu0 0.0
          %333 = vmatprep.subr.mxu0 0.0
          %334 = vmatpush1.msra.mxu0 0.0
          %335 = vmatprep.subr.mxu0 0.0
          %336 = vmatpush1.msra.mxu0 0.0
          %337 = vmatprep.subr.mxu0 0.0
          %338 = vmatpush1.msra.mxu0 0.0
          %339 = vmatprep.subr.mxu0 0.0
          %340 = vmatpush1.msra.mxu0 0.0
          %341 = vmatprep.subr.mxu0 0.0
          %342 = vmatpush1.msra.mxu0 0.0
          %343 = vmatprep.subr.mxu0 0.0
          %344 = vmatpush1.msra.mxu0 0.0
          %345 = vmatprep.subr.mxu0 0.0
          %346 = vmatpush1.msra.mxu0 0.0
          %347 = vmatprep.subr.mxu0 0.0
          %348 = vmatpush1.msra.mxu0 0.0
          %349 = vmatprep.subr.mxu0 0.0
          %350 = vmatpush1.msra.mxu0 0.0
          %351 = vmatprep.mubr.f32.mxu0 0.0
          %352 = vmatmul.mubr.f32.gmra.mrb[0].mxu0 %v263
          %v353 = vpop.f32.mrb[0].mxu0
          %v354 = vadd.f32 %v285, %v353
          %v355 = vpop.f32.mrb[0].mxu0
          %356 = vdwg.mxu0
          %vm357 = vcmask 17408
          %358 = vst.msk [vmem:[#allocation6] sm:$0x3] %vm357, %v354
        $region44: #{tpu_custom_call.1} parent=31 // pred_fallthru
          _
        // Predicated region
        $region45: #{tpu_custom_call.1} parent=31 // pred_check
          %p359 = pneg %p99
        $region46: #{tpu_custom_call.1} parent=31 // pred_check_branch
          %361 = sbr.rel (%p359) target = $region48
        $region47: #{tpu_custom_call.1} parent=31 // pred_region
          %s363 = ssub.s32 32, 32
          %364 = vsyncadd [#allocation5], %s363
          %s366 = sshll.u32 [#allocation6], 4
          %s367 = int_to_ptr.vmem [resolvable:$true] %s366
          %369 = dma.vmem_to_hbm [thread:$0]  %s367, 32, %s3, [#allocation5]
        $region48: #{tpu_custom_call.1} parent=31 // pred_fallthru
          _
        // Predicated region
        $region49: #{tpu_custom_call.1} parent=31 // pred_check
          %p370 = pneg %p99
        $region50: #{tpu_custom_call.1} parent=31 // pred_check_branch
          %372 = sbr.rel (%p370) target = $region52
        $region51: #{tpu_custom_call.1} parent=31 // pred_region
          %373 = dma.done [#allocation5], 32
        $region52: #{tpu_custom_call.1} parent=31 // pred_fallthru
          _
      $region32: #{tpu_custom_call.1} parent=5 // pred_fallthru
        _
      %p374 = scmp.le.s32.totalorder 2, %s13
      // Predicated region
      $region53: #{tpu_custom_call.1} parent=5 // pred_check
        %p375 = pneg %p374
      $region54: #{tpu_custom_call.1} parent=5 // pred_check_branch
        %377 = sbr.rel (%p375) target = $region56
      $region55: #{tpu_custom_call.1} parent=5 // pred_region
        %s378 = ssub.s32 %s13, 2
      $region56: #{tpu_custom_call.1} parent=5 // pred_fallthru
        _
    $region6: #{tpu_custom_call.1} parent=1 // loop_footer
      %s17 = sadd.s32 1, %s13
    $region7: #{tpu_custom_call.1} parent=1 // loop_footer_branch
      %12 = sbr.rel target = $region3
    $region8: #{tpu_custom_call.1} parent=1 // loop_exit
      _
    %379 = vsyncpa [#allocation4], 1
    %s380 = scalar_lea.sflag [#allocation4], 1
    %381 = vsyncpa %s380, 1
    %382 = vsyncpa [#allocation5], 1
    %s383 = scalar_lea.sflag [#allocation5], 1
    %384 = vsyncpa %s383, 1

</llo_original>
